<compile_context>
chip_gen: v6e
topology: v6e:2x2x1
jax: 0.10.0
libtpu: 0.0.40
codegen_flags: <defaults>
</compile_context>

<pallas_src>
import functools

import jax
import jax.numpy as jnp
from jax.experimental import pallas as pl
from jax.experimental.pallas import tpu as pltpu


def _se_block_kernel(x_ref, w1_ref, b1_ref, w2_ref, b2_ref, o_ref, acc_ref, *,
                     inv_s, s_tail):
    # x_ref : (1, C, TILE_S)  current spatial tile of one batch row (native dtype)
    # w1_ref: (Cr, C)  b1_ref: (Cr, 1)  w2_ref: (C, Cr)  b2_ref: (C, 1)
    # o_ref : (1, C, 1)       acc_ref: (C, 1) f32 scratch (persists over k)
    k = pl.program_id(1)
    n_k = pl.num_programs(1)

    @pl.when(k == 0)
    def _zero():
        acc_ref[...] = jnp.zeros_like(acc_ref)

    # ---- squeeze: partial sum of this spatial tile (f32 accumulation) ----
    x = x_ref[0].astype(jnp.float32)                          # (C, TILE_S)

    if s_tail:
        # Ragged S: the last grid step's block extends past the true spatial
        # extent; the DMA'd contents there are undefined, so zero them (select,
        # not multiply -> NaN-safe) before the partial sum.  Only the last
        # reduction step pays for the iota/compare/select.
        @pl.when(k == n_k - 1)
        def _masked_partial_sum():
            col = jax.lax.broadcasted_iota(jnp.int32, x.shape, 1)
            xm = jnp.where(col < s_tail, x, 0.0)
            acc_ref[...] += jnp.sum(xm, axis=-1, keepdims=True)

        @pl.when(k != n_k - 1)
        def _partial_sum():
            acc_ref[...] += jnp.sum(x, axis=-1, keepdims=True)
    else:
        acc_ref[...] += jnp.sum(x, axis=-1, keepdims=True)

    # ---- excitation epilogue: only on the final reduction step ----
    # Column orientation: the PyTorch Linear layouts (Cr, C) / (C, Cr) are used
    # directly, no in-kernel transposes.  These (Cr,C)x(C,1) matmuls run once
    # per batch row and are negligible next to the streaming reduction.
    @pl.when(k == n_k - 1)
    def _finalize():
        pooled = acc_ref[...] * inv_s                         # (C, 1) mean over D,H,W
        h = jnp.dot(w1_ref[...].astype(jnp.float32), pooled,
                    preferred_element_type=jnp.float32)
        h = jnp.maximum(h + b1_ref[...].astype(jnp.float32), 0.0)   # (Cr, 1)
        y = jnp.dot(w2_ref[...].astype(jnp.float32), h,
                    preferred_element_type=jnp.float32)
        y = jax.nn.sigmoid(y + b2_ref[...].astype(jnp.float32))     # (C, 1)
        o_ref[0] = y.astype(o_ref.dtype)


def _pick_tile_s(S, C, itemsize, tile_s=None):
    """Spatial tile width (lanes): multiple of 128, generation-aware byte target."""
    s_rounded = ((S + 127) // 128) * 128
    if tile_s is not None:
        return min(max(128, (int(tile_s) // 128) * 128), s_rounded)
    try:
        vmem_bytes = int(getattr(pltpu.get_tpu_info(), "vmem_capacity_bytes",
                                 64 * 1024 * 1024))
    except Exception:
        vmem_bytes = 64 * 1024 * 1024      # conservative (v7x-sized) fallback
    # ~1/8 of physical VMEM per streamed block: 16 MiB on v5e/v6e (128 MiB VMEM),
    # 8 MiB on v7x (64 MiB VMEM).  Clamp to [4, 16] MiB.
    target_bytes = max(4 << 20, min(16 << 20, vmem_bytes // 8))
    t = (target_bytes // max(1, C * itemsize)) // 128 * 128
    # Floor: keep each per-channel contiguous DMA run >= ~2 KiB so the C-row
    # strided block DMA sustains HBM bandwidth even for large C.
    row_floor = -(-(2048 // itemsize) // 128) * 128
    t = max(t, row_floor, 128)
    return min(t, s_rounded)


def se_block_forward(x, w1, b1, w2, b2, *, tile_s=None):
    """x: (B, C, D, H, W). Returns (B, C, 1, 1, 1). Weights in PyTorch Linear layout."""
    B, C, D, H, W = x.shape
    S = D * H * W
    Cr = w1.shape[0]

    tile_s = _pick_tile_s(S, C, x.dtype.itemsize, tile_s)
    n_s = -(-S // tile_s)            # reduction tiles; the last one may be partial
    s_tail = S % tile_s              # valid lanes in the last tile (0 == full tile)

    x_flat = x.reshape(B, C, S)      # contiguous reshape: free, no HBM copy, no pad
    b1_col = b1.reshape(Cr, 1)
    b2_col = b2.reshape(C, 1)

    # 1/S and the tail extent are baked statically: the grid already depends on
    # the spatial shape, so per-shape compilation happens regardless (an SMEM
    # scalar would not remove any recompiles here).
    kernel = functools.partial(_se_block_kernel, inv_s=1.0 / float(S), s_tail=s_tail)

    # Double-buffered x stream + (tiny) resident weights must fit scoped VMEM.
    block_bytes = C * tile_s * x.dtype.itemsize
    w_bytes = ((w1.size + w2.size) * w1.dtype.itemsize
               + (b1.size + b2.size) * b1.dtype.itemsize)
    vmem_limit = min(max(2 * block_bytes + 2 * w_bytes + (8 << 20), 32 << 20),
                     128 << 20)

    out = pl.pallas_call(
        kernel,
        out_shape=jax.ShapeDtypeStruct((B, C, 1), x.dtype),
        grid=(B, n_s),
        in_specs=[
            pl.BlockSpec((1, C, tile_s), lambda b, k: (b, 0, k)),   # streamed x tiles
            pl.BlockSpec((Cr, C), lambda b, k: (0, 0)),             # W1 (resident)
            pl.BlockSpec((Cr, 1), lambda b, k: (0, 0)),             # b1
            pl.BlockSpec((C, Cr), lambda b, k: (0, 0)),             # W2
            pl.BlockSpec((C, 1), lambda b, k: (0, 0)),              # b2
        ],
        # Output stays (1, C, 1): a lane-dense (1, C) store would require a
        # sublane->lane relayout of the tiny (C, 1) result inside the kernel,
        # which costs more than the B*C-element writeback it saves.
        out_specs=pl.BlockSpec((1, C, 1), lambda b, k: (b, 0, 0)),
        scratch_shapes=[pltpu.VMEM((C, 1), jnp.float32)],           # pooled-sum accumulator
        compiler_params=pltpu.CompilerParams(
            # B is the only parallel axis; S carries the accumulator.
            # NOTE(perf, v7x): for B == 1 one TensorCore idles; recovering it
            # would require splitting the S reduction into per-core partial
            # sums and hoisting the combine + excitation MLP out of the kernel.
            dimension_semantics=("parallel", "arbitrary"),
            vmem_limit_bytes=int(vmem_limit),
        ),
    )(x_flat, w1, b1_col, w2, b2_col)

    return out.reshape(B, C, 1, 1, 1)


def _reference(x, w1, b1, w2, b2):
    pooled = jnp.mean(x.astype(jnp.float32), axis=(2, 3, 4))
    h = jnp.maximum(pooled @ w1.T + b1, 0.0)
    y = jax.nn.sigmoid(h @ w2.T + b2)
    return y.reshape(x.shape[0], x.shape[1], 1, 1, 1).astype(x.dtype)


if __name__ == "__main__":
    # Shapes consistent with the module: in_channels=32, r=16 -> hidden=2
    B, C, r = 2, 32, 16
    Cr = C // r

    key = jax.random.PRNGKey(0)
    kx, k1, k2, k3, k4, kx2 = jax.random.split(key, 6)

    # PyTorch Linear layouts: weight (out, in), bias (out,)
    w1 = jax.random.normal(k1, (Cr, C), dtype=jnp.float32) * 0.1
    b1 = jax.random.normal(k2, (Cr,), dtype=jnp.float32) * 0.1
    w2 = jax.random.normal(k3, (C, Cr), dtype=jnp.float32) * 0.1
    b2 = jax.random.normal(k4, (C,), dtype=jnp.float32) * 0.1

    # 1) Auto-sized tile (S = 8*16*16 = 2048, divisible by 128 -> no masking).
    x = jax.random.normal(kx, (B, C, 8, 16, 16), dtype=jnp.float32)
    out = jax.block_until_ready(se_block_forward(x, w1, b1, w2, b2))
    ref = _reference(x, w1, b1, w2, b2)
    assert out.shape == (B, C, 1, 1, 1)
    assert jnp.allclose(out, ref, atol=2e-5, rtol=2e-5), "mismatch vs reference"

    # 2) Ragged spatial extent + multi-step reduction: S = 7*9*11 = 693,
    #    tile_s=512 -> 2 reduction steps, last tile keeps 181 valid columns
    #    (exercises zero-init, accumulation and the in-kernel tail mask).
    x2 = jax.random.normal(kx2, (B, C, 7, 9, 11), dtype=jnp.float32)
    out2 = jax.block_until_ready(se_block_forward(x2, w1, b1, w2, b2, tile_s=512))
    ref2 = _reference(x2, w1, b1, w2, b2)
    assert out2.shape == (B, C, 1, 1, 1)
    assert jnp.allclose(out2, ref2, atol=2e-5, rtol=2e-5), "mismatch (ragged S)"

    # 3) bf16 streaming (halves HBM traffic; accumulation stays f32 in-kernel).
    xb, w1b, b1b = x2.astype(jnp.bfloat16), w1.astype(jnp.bfloat16), b1.astype(jnp.bfloat16)
    w2b, b2b = w2.astype(jnp.bfloat16), b2.astype(jnp.bfloat16)
    outb = jax.block_until_ready(se_block_forward(xb, w1b, b1b, w2b, b2b))
    refb = _reference(xb, w1b, b1b, w2b, b2b)
    assert jnp.allclose(outb.astype(jnp.float32), refb.astype(jnp.float32),
                        atol=1e-2, rtol=1e-2), "mismatch (bf16)"

    print("KERNEL_OK")
</pallas_src>

<mosaic_0001>
module attributes {stable_mosaic.version = 11 : i64} {
  func.func @_se_block_kernel(%arg0: i32, %arg1: i32, %arg2: memref<1x32x2048xf32, #tpu.memory_space<vmem>>, %arg3: memref<2x32xf32, #tpu.memory_space<vmem>>, %arg4: memref<2x1xf32, #tpu.memory_space<vmem>>, %arg5: memref<32x2xf32, #tpu.memory_space<vmem>>, %arg6: memref<32x1xf32, #tpu.memory_space<vmem>>, %arg7: memref<1x32x1xf32, #tpu.memory_space<vmem>>, %arg8: memref<32x1xf32, #tpu.memory_space<vmem>>) attributes {dimension_semantics = [#tpu.dimension_semantics<parallel>, #tpu.dimension_semantics<arbitrary>], iteration_bounds = array<i64: 2, 1>, scalar_prefetch = 0 : i64, scratch_operands = 1 : i64, tpu.core_type = #tpu.core_type<tc>, window_params = [{transform_indices = @transform_0, window_bounds = array<i64: 1, 32, 2048>}, {pipeline_mode = #tpu.pipeline_mode<synchronous>, transform_indices = @transform_1, window_bounds = array<i64: 2, 32>}, {pipeline_mode = #tpu.pipeline_mode<synchronous>, transform_indices = @transform_2, window_bounds = array<i64: 2, 1>}, {pipeline_mode = #tpu.pipeline_mode<synchronous>, transform_indices = @transform_3, window_bounds = array<i64: 32, 2>}, {pipeline_mode = #tpu.pipeline_mode<synchronous>, transform_indices = @transform_4, window_bounds = array<i64: 32, 1>}, {transform_indices = @transform_5, window_bounds = array<i64: 1, 32, 1>}]} {
    %c0_i32 = arith.constant 0 : i32
    %0 = arith.cmpi eq, %arg1, %c0_i32 : i32
    %1 = arith.extui %0 : i1 to i32
    %c0_i32_0 = arith.constant 0 : i32
    %2 = arith.cmpi ne, %1, %c0_i32_0 : i32
    scf.if %2 {
      %cst_9 = arith.constant 0.000000e+00 : f32
      %13 = vector.broadcast %cst_9 : f32 to vector<32x1xf32>
      %c0_10 = arith.constant 0 : index
      %c0_11 = arith.constant 0 : index
      %14 = vector.load %arg8[%c0_10, %c0_11] : memref<32x1xf32, #tpu.memory_space<vmem>>, vector<32x1xf32>
      tpu.vector_store %arg8[%c0_10, %c0_11], %13 {strides = array<i32>} : memref<32x1xf32, #tpu.memory_space<vmem>>, vector<32x1xf32>,
    } else {
    }
    %c0 = arith.constant 0 : index
    %c0_1 = arith.constant 0 : index
    %c0_2 = arith.constant 0 : index
    %3 = vector.load %arg2[%c0, %c0_1, %c0_2] : memref<1x32x2048xf32, #tpu.memory_space<vmem>>, vector<1x32x2048xf32>
    %4 = vector.shape_cast %3 : vector<1x32x2048xf32> to vector<32x2048xf32>
    %c0_3 = arith.constant 0 : index
    %c0_4 = arith.constant 0 : index
    %5 = vector.load %arg8[%c0_3, %c0_4] : memref<32x1xf32, #tpu.memory_space<vmem>>, vector<32x1xf32>
    %cst = arith.constant dense<0.000000e+00> : vector<32xf32>
    %6 = vector.multi_reduction <add>, %4, %cst [1] : vector<32x2048xf32> to vector<32xf32>
    %7 = vector.shape_cast %6 : vector<32xf32> to vector<32x1xf32>
    %8 = arith.addf %5, %7 : vector<32x1xf32>
    %c0_5 = arith.constant 0 : index
    %c0_6 = arith.constant 0 : index
    %9 = vector.load %arg8[%c0_5, %c0_6] : memref<32x1xf32, #tpu.memory_space<vmem>>, vector<32x1xf32>
    tpu.vector_store %arg8[%c0_5, %c0_6], %8 {strides = array<i32>} : memref<32x1xf32, #tpu.memory_space<vmem>>, vector<32x1xf32>,
    %c0_i32_7 = arith.constant 0 : i32
    %10 = arith.cmpi eq, %arg1, %c0_i32_7 : i32
    %11 = arith.extui %10 : i1 to i32
    %c0_i32_8 = arith.constant 0 : i32
    %12 = arith.cmpi ne, %11, %c0_i32_8 : i32
    scf.if %12 {
      %c0_9 = arith.constant 0 : index
      %c0_10 = arith.constant 0 : index
      %13 = vector.load %arg8[%c0_9, %c0_10] : memref<32x1xf32, #tpu.memory_space<vmem>>, vector<32x1xf32>
      %cst_11 = arith.constant 4.8828125E-4 : f32
      %14 = vector.broadcast %cst_11 : f32 to vector<32x1xf32>
      %15 = arith.mulf %13, %14 : vector<32x1xf32>
      %c0_12 = arith.constant 0 : index
      %c0_13 = arith.constant 0 : index
      %16 = vector.load %arg3[%c0_12, %c0_13] : memref<2x32xf32, #tpu.memory_space<vmem>>, vector<2x32xf32>
      %cst_14 = arith.constant dense<0.000000e+00> : vector<2x1xf32>
      %17 = tpu.matmul %16, %15, %cst_14 {dimension_numbers = #tpu.dot_dimension_numbers<[1], [0], [0], [1], [0, 0, 1, 1], [], []>} : vector<2x32xf32>, vector<32x1xf32>, vector<2x1xf32> -> vector<2x1xf32>
      %c0_15 = arith.constant 0 : index
      %c0_16 = arith.constant 0 : index
      %18 = vector.load %arg4[%c0_15, %c0_16] : memref<2x1xf32, #tpu.memory_space<vmem>>, vector<2x1xf32>
      %19 = arith.addf %17, %18 : vector<2x1xf32>
      %cst_17 = arith.constant 0.000000e+00 : f32
      %20 = vector.broadcast %cst_17 : f32 to vector<2x1xf32>
      %21 = arith.maximumf %19, %20 : vector<2x1xf32>
      %c0_18 = arith.constant 0 : index
      %c0_19 = arith.constant 0 : index
      %22 = vector.load %arg5[%c0_18, %c0_19] : memref<32x2xf32, #tpu.memory_space<vmem>>, vector<32x2xf32>
      %cst_20 = arith.constant dense<0.000000e+00> : vector<32x1xf32>
      %23 = tpu.matmul %22, %21, %cst_20 {dimension_numbers = #tpu.dot_dimension_numbers<[1], [0], [0], [1], [0, 0, 1, 1], [], []>} : vector<32x2xf32>, vector<2x1xf32>, vector<32x1xf32> -> vector<32x1xf32>
      %c0_21 = arith.constant 0 : index
      %c0_22 = arith.constant 0 : index
      %24 = vector.load %arg6[%c0_21, %c0_22] : memref<32x1xf32, #tpu.memory_space<vmem>>, vector<32x1xf32>
      %25 = arith.addf %23, %24 : vector<32x1xf32>
      %26 = arith.negf %25 : vector<32x1xf32>
      %27 = math.exp %26 : vector<32x1xf32>
      %cst_23 = arith.constant 1.000000e+00 : f32
      %28 = vector.broadcast %cst_23 : f32 to vector<32x1xf32>
      %29 = arith.addf %28, %27 : vector<32x1xf32>
      %30 = arith.divf %28, %29 : vector<32x1xf32>
      %c0_24 = arith.constant 0 : index
      %c0_25 = arith.constant 0 : index
      %c0_26 = arith.constant 0 : index
      %31 = vector.load %arg7[%c0_24, %c0_25, %c0_26] : memref<1x32x1xf32, #tpu.memory_space<vmem>>, vector<1x32x1xf32>
      %32 = vector.shape_cast %31 : vector<1x32x1xf32> to vector<32x1xf32>
      %33 = vector.shape_cast %30 : vector<32x1xf32> to vector<1x32x1xf32>
      tpu.vector_store %arg7[%c0_24, %c0_25, %c0_26], %33 {strides = array<i32>} : memref<1x32x1xf32, #tpu.memory_space<vmem>>, vector<1x32x1xf32>,
    } else {
    }
    return
  }
  func.func @transform_0(%arg0: i32, %arg1: i32) -> (i32, i32, i32) {
    %c0_i32 = arith.constant 0 : i32
    %c0_i32_0 = arith.constant 0 : i32
    return %arg0, %c0_i32, %arg1 : i32, i32, i32
  }
  func.func @transform_1(%arg0: i32, %arg1: i32) -> (i32, i32) {
    %c0_i32 = arith.constant 0 : i32
    %c0_i32_0 = arith.constant 0 : i32
    %c0_i32_1 = arith.constant 0 : i32
    return %c0_i32, %c0_i32_0 : i32, i32
  }
  func.func @transform_2(%arg0: i32, %arg1: i32) -> (i32, i32) {
    %c0_i32 = arith.constant 0 : i32
    %c0_i32_0 = arith.constant 0 : i32
    %c0_i32_1 = arith.constant 0 : i32
    return %c0_i32, %c0_i32_0 : i32, i32
  }
  func.func @transform_3(%arg0: i32, %arg1: i32) -> (i32, i32) {
    %c0_i32 = arith.constant 0 : i32
    %c0_i32_0 = arith.constant 0 : i32
    %c0_i32_1 = arith.constant 0 : i32
    return %c0_i32, %c0_i32_0 : i32, i32
  }
  func.func @transform_4(%arg0: i32, %arg1: i32) -> (i32, i32) {
    %c0_i32 = arith.constant 0 : i32
    %c0_i32_0 = arith.constant 0 : i32
    %c0_i32_1 = arith.constant 0 : i32
    return %c0_i32, %c0_i32_0 : i32, i32
  }
  func.func @transform_5(%arg0: i32, %arg1: i32) -> (i32, i32, i32) {
    %c0_i32 = arith.constant 0 : i32
    %c0_i32_0 = arith.constant 0 : i32
    %c0_i32_1 = arith.constant 0 : i32
    return %arg0, %c0_i32, %c0_i32_0 : i32, i32, i32
  }
}

</mosaic_0001>

<llo_original>
// kernel: tpu_custom_call.1
$region0: #{tpu_custom_call.1}
  #allocation0 [shape = 'u32[]', space=smem, size = 0x4, offset = 0x4, fixed_abs, tag = 'smem constant byte address 0x4 - core index']
  #allocation1 [shape = 'u32[144,128]{1,0:T(1,128)}', space=vmem, size = 0x12000, scoped, tag = 'internal scratch']
  #allocation2 [shape = 'f32[32,1]{1,0:T(8,128)}', space=vmem, size = 0x4000, scoped, tag = 'scratch operand']
  %s0 = inlined_call_operand.hbm [shape: f32[2,32,2048], index: 0, kind: input, shape index: {}]
  %s1 = inlined_call_operand.vmem [shape: f32[2,32], index: 1, kind: input, shape index: {}]
  %s2 = inlined_call_operand.vmem [shape: f32[2,1], index: 2, kind: input, shape index: {}]
  %s3 = inlined_call_operand.vmem [shape: f32[32,2], index: 3, kind: input, shape index: {}]
  %s4 = inlined_call_operand.vmem [shape: f32[32,1], index: 4, kind: input, shape index: {}]
  %s5 = inlined_call_operand.vmem [shape: f32[2,32,1], index: 5, kind: output, shape index: {}]
  %s6 = sld [smem:[#allocation0]]
  $region65: #{tpu_custom_call.1} parent=0
    _
  %s8 = ssub.s32 1, %s6
  %s9 = scalar_select 0, %s8, %s6
  $region1: #{tpu_custom_call.1} parent=0
    #allocation3 [shape = 'u8[524288]{0}', space=vmem, size = 0x80000, scoped, tag = 'input window, operand 0']
    #allocation4 [shape = 's32[2]{0}', space=sflag, size = 0x8, scoped, tag = 'scoped memory for tpu_custom_call.1']
    %10 = vsyncpa [#allocation4], 0
    %s11 = scalar_lea.sflag [#allocation4], 1
    %12 = vsyncpa %s11, 0
    loop: start=0, step=1, limit=4
    $region2: #{tpu_custom_call.1} parent=1 // loop_pre_header
      _
    $region3: #{tpu_custom_call.1} parent=1 // loop_header
      %s14 = sphi 0, %s18
      %p15 = scmp.ge.s32.totalorder %s14, 4
      %s21 = sphi 0, %s33
      %s22 = sphi 0, %s29
      %s23 = sphi 0, %s21
      %s24 = sphi 0, %s22
      %s25 = sphi 0, %s23
      %s26 = sphi 0, %s24
      %s38 = sphi 0, %s40
      %s41 = sphi 0, %s38
      %s42 = sphi 0, %s41
      %s58 = sphi 0, %s42
      %s62 = sphi 0, %s62
      %s64 = sphi 0, %s62
      %s65 = sphi 0, %s64
      %s79 = sphi 0, %s65
      %s83 = sphi 0, %s83
      %s85 = sphi 0, %s83
      %s86 = sphi 0, %s85
      %s100 = sphi 0, %s86
      %s104 = sphi 0, %s104
      %s106 = sphi 0, %s104
      %s107 = sphi 0, %s106
      %s121 = sphi 0, %s107
      %s125 = sphi 0, %s125
      %s127 = sphi 0, %s125
      %s128 = sphi 0, %s127
      %s142 = sphi 0, %s128
      %s148 = sphi 0, %s150
      %s151 = sphi 0, %s148
      %s152 = sphi 0, %s151
      %s168 = sphi 0, %s152
    $region4: #{tpu_custom_call.1} parent=1 // loop_header_branch
      %17 = sbr.rel (%p15) target = $region8
    $region5: #{tpu_custom_call.1} parent=1 // loop_body
      %s19 = ssub.s32 %s14, 1
      %s20 = ssub.s32 %s14, 2
      %s27 = sadd.s32 1, %s22
      %p28 = scmp.ge.s32.totalorder %s27, 1
      %s29 = scalar_select %p28, 0, %s27
      %s30 = sadd.s32 1, %s21
      %s31 = scalar_select %p28, %s30, %s21
      %p32 = scmp.ge.s32.totalorder %s31, 2
      %s33 = scalar_select %p32, 0, %s31
      %s34 = ssub.s32 %s21, %s33
      %s35 = ssub.s32 %s22, %s29
      %s36 = sor.u32 %s34, %s35
      %p37 = scmp.eq.s32.totalorder %s36, 0
      %s39 = sadd.s32 %s38, 1
      %s40 = scalar_select %p37, %s38, %s39
      %p43 = pneg %p37
      %p44 = scmp.eq.s32.totalorder %s14, 1
      %p45 = por %p43, %p44
      %p46 = scmp.ne.s32.totalorder %s38, %s41
      %p47 = scmp.eq.s32.totalorder %s14, 0
      %p48 = por %p46, %p47
      %p49 = scmp.ne.s32.totalorder %s38, %s41
      %p50 = scmp.eq.s32.totalorder %s19, 1
      %p51 = por %p49, %p50
      %p52 = scmp.ne.s32.totalorder %s41, %s42
      %p53 = scmp.eq.s32.totalorder %s19, 0
      %p54 = por %p52, %p53
      %p55 = scmp.ne.s32.totalorder %s41, %s42
      %p56 = scmp.eq.s32.totalorder %s20, 1
      %p57 = por %p55, %p56
      %p59 = scmp.ne.s32.totalorder %s42, %s58
      %p60 = scmp.eq.s32.totalorder %s20, 0
      %p61 = por %p59, %p60
      %s63 = sadd.s32 %s62, 1
      %p66 = scmp.eq.s32.totalorder %s14, 1
      %p67 = scmp.ne.s32.totalorder %s62, %s64
      %p68 = scmp.eq.s32.totalorder %s14, 0
      %p69 = por %p67, %p68
      %p70 = scmp.ne.s32.totalorder %s62, %s64
      %p71 = scmp.eq.s32.totalorder %s19, 1
      %p72 = por %p70, %p71
      %p73 = scmp.ne.s32.totalorder %s64, %s65
      %p74 = scmp.eq.s32.totalorder %s19, 0
      %p75 = por %p73, %p74
      %p76 = scmp.ne.s32.totalorder %s64, %s65
      %p77 = scmp.eq.s32.totalorder %s20, 1
      %p78 = por %p76, %p77
      %p80 = scmp.ne.s32.totalorder %s65, %s79
      %p81 = scmp.eq.s32.totalorder %s20, 0
      %p82 = por %p80, %p81
      %s84 = sadd.s32 %s83, 1
      %p87 = scmp.eq.s32.totalorder %s14, 1
      %p88 = scmp.ne.s32.totalorder %s83, %s85
      %p89 = scmp.eq.s32.totalorder %s14, 0
      %p90 = por %p88, %p89
      %p91 = scmp.ne.s32.totalorder %s83, %s85
      %p92 = scmp.eq.s32.totalorder %s19, 1
      %p93 = por %p91, %p92
      %p94 = scmp.ne.s32.totalorder %s85, %s86
      %p95 = scmp.eq.s32.totalorder %s19, 0
      %p96 = por %p94, %p95
      %p97 = scmp.ne.s32.totalorder %s85, %s86
      %p98 = scmp.eq.s32.totalorder %s20, 1
      %p99 = por %p97, %p98
      %p101 = scmp.ne.s32.totalorder %s86, %s100
      %p102 = scmp.eq.s32.totalorder %s20, 0
      %p103 = por %p101, %p102
      %s105 = sadd.s32 %s104, 1
      %p108 = scmp.eq.s32.totalorder %s14, 1
      %p109 = scmp.ne.s32.totalorder %s104, %s106
      %p110 = scmp.eq.s32.totalorder %s14, 0
      %p111 = por %p109, %p110
      %p112 = scmp.ne.s32.totalorder %s104, %s106
      %p113 = scmp.eq.s32.totalorder %s19, 1
      %p114 = por %p112, %p113
      %p115 = scmp.ne.s32.totalorder %s106, %s107
      %p116 = scmp.eq.s32.totalorder %s19, 0
      %p117 = por %p115, %p116
      %p118 = scmp.ne.s32.totalorder %s106, %s107
      %p119 = scmp.eq.s32.totalorder %s20, 1
      %p120 = por %p118, %p119
      %p122 = scmp.ne.s32.totalorder %s107, %s121
      %p123 = scmp.eq.s32.totalorder %s20, 0
      %p124 = por %p122, %p123
      %s126 = sadd.s32 %s125, 1
      %p129 = scmp.eq.s32.totalorder %s14, 1
      %p130 = scmp.ne.s32.totalorder %s125, %s127
      %p131 = scmp.eq.s32.totalorder %s14, 0
      %p132 = por %p130, %p131
      %p133 = scmp.ne.s32.totalorder %s125, %s127
      %p134 = scmp.eq.s32.totalorder %s19, 1
      %p135 = por %p133, %p134
      %p136 = scmp.ne.s32.totalorder %s127, %s128
      %p137 = scmp.eq.s32.totalorder %s19, 0
      %p138 = por %p136, %p137
      %p139 = scmp.ne.s32.totalorder %s127, %s128
      %p140 = scmp.eq.s32.totalorder %s20, 1
      %p141 = por %p139, %p140
      %p143 = scmp.ne.s32.totalorder %s128, %s142
      %p144 = scmp.eq.s32.totalorder %s20, 0
      %p145 = por %p143, %p144
      %s146 = ssub.s32 %s21, %s33
      %p147 = scmp.eq.s32.totalorder %s146, 0
      %s149 = sadd.s32 %s148, 1
      %s150 = scalar_select %p147, %s148, %s149
      %p153 = pneg %p147
      %p154 = scmp.eq.s32.totalorder %s14, 1
      %p155 = por %p153, %p154
      %p156 = scmp.ne.s32.totalorder %s148, %s151
      %p157 = scmp.eq.s32.totalorder %s14, 0
      %p158 = por %p156, %p157
      %p159 = scmp.ne.s32.totalorder %s148, %s151
      %p160 = scmp.eq.s32.totalorder %s19, 1
      %p161 = por %p159, %p160
      %p162 = scmp.ne.s32.totalorder %s151, %s152
      %p163 = scmp.eq.s32.totalorder %s19, 0
      %p164 = por %p162, %p163
      %p165 = scmp.ne.s32.totalorder %s151, %s152
      %p166 = scmp.eq.s32.totalorder %s20, 1
      %p167 = por %p165, %p166
      %p169 = scmp.ne.s32.totalorder %s152, %s168
      %p170 = scmp.eq.s32.totalorder %s20, 0
      %p171 = por %p169, %p170
      %p172 = scmp.le.s32.totalorder 1, %s14
      %p173 = scmp.lt.s32.totalorder %s14, 3
      %p174 = pnand %p172, %p173
      %p175 = pneg %p174
      // Predicated region
      $region9: #{tpu_custom_call.1} parent=5 // pred_check
        _
      $region10: #{tpu_custom_call.1} parent=5 // pred_check_branch
        %177 = sbr.rel (%p174) target = $region12
      $region11: #{tpu_custom_call.1} parent=5 // pred_region
        %s178 = ssub.s32 %s14, 1
        // Predicated region
        $region13: #{tpu_custom_call.1} parent=11 // pred_check
          %p179 = pneg %p75
        $region14: #{tpu_custom_call.1} parent=11 // pred_check_branch
          %181 = sbr.rel (%p179) target = $region16
        $region15: #{tpu_custom_call.1} parent=11 // pred_region
          _
        $region16: #{tpu_custom_call.1} parent=11 // pred_fallthru
          _
        // Predicated region
        $region17: #{tpu_custom_call.1} parent=11 // pred_check
          %p182 = pneg %p96
        $region18: #{tpu_custom_call.1} parent=11 // pred_check_branch
          %184 = sbr.rel (%p182) target = $region20
        $region19: #{tpu_custom_call.1} parent=11 // pred_region
          _
        $region20: #{tpu_custom_call.1} parent=11 // pred_fallthru
          _
        // Predicated region
        $region21: #{tpu_custom_call.1} parent=11 // pred_check
          %p185 = pneg %p117
        $region22: #{tpu_custom_call.1} parent=11 // pred_check_branch
          %187 = sbr.rel (%p185) target = $region24
        $region23: #{tpu_custom_call.1} parent=11 // pred_region
          _
        $region24: #{tpu_custom_call.1} parent=11 // pred_fallthru
          _
        // Predicated region
        $region25: #{tpu_custom_call.1} parent=11 // pred_check
          %p188 = pneg %p138
        $region26: #{tpu_custom_call.1} parent=11 // pred_check_branch
          %190 = sbr.rel (%p188) target = $region28
        $region27: #{tpu_custom_call.1} parent=11 // pred_region
          _
        $region28: #{tpu_custom_call.1} parent=11 // pred_fallthru
          _
      $region12: #{tpu_custom_call.1} parent=5 // pred_fallthru
        _
      %p191 = scmp.lt.s32.totalorder %s14, 2
      // Predicated region
      $region29: #{tpu_custom_call.1} parent=5 // pred_check
        %p192 = pneg %p191
      $region30: #{tpu_custom_call.1} parent=5 // pred_check_branch
        %194 = sbr.rel (%p192) target = $region32
      $region31: #{tpu_custom_call.1} parent=5 // pred_region
        // Predicated region
        $region33: #{tpu_custom_call.1} parent=31 // pred_check
          %p195 = pneg %p48
        $region34: #{tpu_custom_call.1} parent=31 // pred_check_branch
          %197 = sbr.rel (%p195) target = $region36
        $region35: #{tpu_custom_call.1} parent=31 // pred_region
          %s198 = sand.u32 %s38, 1
          %s199 = scalar_lea.sflag [#allocation4], %s198
          %s200 = sand.u32 %s38, 1
          %s201 = smul.addr %s200, 512
          %s202 = scalar_lea.vmem [#allocation3], %s201
          %s203 = smul.u32 16, %s22
          %s205 = ssub.s32 8192, 8192
          %206 = vsyncadd %s199, %s205
          %s207 = smul.addr %s21, 64
          %s208 = sadd.s32 %s203, %s207
          %s209 = smul.addr %s208, 128
          %s210 = scalar_lea.hbm %s0, %s209
          %s211 = sshll.u32 %s202, 4
          %s212 = int_to_ptr.vmem [resolvable:$true] %s211
          %217 = dma.hbm_to_vmem [thread:$0]  %s210, 8192, %s212, %s199, 2048, 2048, 128
        $region36: #{tpu_custom_call.1} parent=31 // pred_fallthru
          _
      $region32: #{tpu_custom_call.1} parent=5 // pred_fallthru
        _
      %p218 = scmp.le.s32.totalorder 1, %s14
      %p219 = scmp.lt.s32.totalorder %s14, 3
      %p220 = pnand %p218, %p219
      %p221 = pneg %p220
      // Predicated region
      $region37: #{tpu_custom_call.1} parent=5 // pred_check
        _
      $region38: #{tpu_custom_call.1} parent=5 // pred_check_branch
        %223 = sbr.rel (%p220) target = $region40
      $region39: #{tpu_custom_call.1} parent=5 // pred_region
        %s224 = ssub.s32 %s14, 1
        %s225 = sand.u32 %s41, 1
        %s226 = scalar_lea.sflag [#allocation4], %s225
        %s227 = sand.u32 %s41, 1
        %s228 = smul.addr %s227, 512
        %s229 = scalar_lea.vmem [#allocation3], %s228
        // Predicated region
        $region41: #{tpu_custom_call.1} parent=39 // pred_check
          %p230 = pneg %p54
        $region42: #{tpu_custom_call.1} parent=39 // pred_check_branch
          %232 = sbr.rel (%p230) target = $region44
        $region43: #{tpu_custom_call.1} parent=39 // pred_region
          %233 = dma.done %s226, 8192
        $region44: #{tpu_custom_call.1} parent=39 // pred_fallthru
          _
        %s234 = sand.u32 %s41, 1
        %s235 = scalar_lea.sflag [#allocation4], %s234
        %s236 = sand.u32 %s41, 1
        %s237 = smul.addr %s236, 512
        %s238 = scalar_lea.vmem [#allocation3], %s237
        %p239 = pneg %p54
        %p240 = pneg %p51
        %p241 = pneg %p75
        %p242 = pneg %p72
        %p243 = pneg %p96
        %p244 = pneg %p93
        %p245 = pneg %p117
        %p246 = pneg %p114
        %p247 = pneg %p138
        %p248 = pneg %p135
        %p249 = pneg %p164
        %p250 = pneg %p161
        %p251 = scmp.lt.s32.totalorder %s23, 1
        %s252 = scalar_select %p251, %s23, 1
        %s253 = smul.addr %s252, 4
        %s254 = smul.addr %s253, 8
        %s255 = scalar_lea.vmem %s5, %s254
        %s256 = smul.u32 16, %s24
        %p257 = scmp.lt.s32.totalorder %s23, 1
        %s258 = scalar_select %p257, %s23, 1
        %s259 = smul.addr %s258, 4
        %s260 = smul.addr %s259, 8
        %s261 = scalar_lea.vmem %s5, %s260
        %p262 = scmp.eq.s32.totalorder %s24, 0
        // Predicated region
        $region45: #{tpu_custom_call.1} parent=39 // pred_check
          %p263 = pneg %p262
        $region46: #{tpu_custom_call.1} parent=39 // pred_check_branch
          %265 = sbr.rel (%p263) target = $region48
        $region47: #{tpu_custom_call.1} parent=39 // pred_region
          %vm266 = vcmask 7168
          %267 = vst.msk [vmem:[#allocation2] sm:$0xff] %vm266, 0.0
          %268 = vst.msk [vmem:[#allocation2 + $0x8] sm:$0xff] %vm266, 0.0
          %269 = vst.msk [vmem:[#allocation2 + $0x10] sm:$0xff] %vm266, 0.0
          %270 = vst.msk [vmem:[#allocation2 + $0x18] sm:$0xff] %vm266, 0.0
        $region48: #{tpu_custom_call.1} parent=39 // pred_fallthru
          _
        %v271 = vld [vmem:[%s229] sm:$0xff]
        %v272 = vld [vmem:[%s229 + $0x8] sm:$0xff]
        %v273 = vld [vmem:[%s229 + $0x10] sm:$0xff]
        %v274 = vld [vmem:[%s229 + $0x18] sm:$0xff]
        %v275 = vld [vmem:[%s229 + $0x20] sm:$0xff]
        %v276 = vld [vmem:[%s229 + $0x28] sm:$0xff]
        %v277 = vld [vmem:[%s229 + $0x30] sm:$0xff]
        %v278 = vld [vmem:[%s229 + $0x38] sm:$0xff]
        %v279 = vld [vmem:[%s229 + $0x40] sm:$0xff]
        %v280 = vld [vmem:[%s229 + $0x48] sm:$0xff]
        %v281 = vld [vmem:[%s229 + $0x50] sm:$0xff]
        %v282 = vld [vmem:[%s229 + $0x58] sm:$0xff]
        %v283 = vld [vmem:[%s229 + $0x60] sm:$0xff]
        %v284 = vld [vmem:[%s229 + $0x68] sm:$0xff]
        %v285 = vld [vmem:[%s229 + $0x70] sm:$0xff]
        %v286 = vld [vmem:[%s229 + $0x78] sm:$0xff]
        %v287 = vld [vmem:[%s229 + $0x80] sm:$0xff]
        %v288 = vld [vmem:[%s229 + $0x88] sm:$0xff]
        %v289 = vld [vmem:[%s229 + $0x90] sm:$0xff]
        %v290 = vld [vmem:[%s229 + $0x98] sm:$0xff]
        %v291 = vld [vmem:[%s229 + $0xa0] sm:$0xff]
        %v292 = vld [vmem:[%s229 + $0xa8] sm:$0xff]
        %v293 = vld [vmem:[%s229 + $0xb0] sm:$0xff]
        %v294 = vld [vmem:[%s229 + $0xb8] sm:$0xff]
        %v295 = vld [vmem:[%s229 + $0xc0] sm:$0xff]
        %v296 = vld [vmem:[%s229 + $0xc8] sm:$0xff]
        %v297 = vld [vmem:[%s229 + $0xd0] sm:$0xff]
        %v298 = vld [vmem:[%s229 + $0xd8] sm:$0xff]
        %v299 = vld [vmem:[%s229 + $0xe0] sm:$0xff]
        %v300 = vld [vmem:[%s229 + $0xe8] sm:$0xff]
        %v301 = vld [vmem:[%s229 + $0xf0] sm:$0xff]
        %v302 = vld [vmem:[%s229 + $0xf8] sm:$0xff]
        %v303 = vld [vmem:[%s229 + $0x100] sm:$0xff]
        %v304 = vld [vmem:[%s229 + $0x108] sm:$0xff]
        %v305 = vld [vmem:[%s229 + $0x110] sm:$0xff]
        %v306 = vld [vmem:[%s229 + $0x118] sm:$0xff]
        %v307 = vld [vmem:[%s229 + $0x120] sm:$0xff]
        %v308 = vld [vmem:[%s229 + $0x128] sm:$0xff]
        %v309 = vld [vmem:[%s229 + $0x130] sm:$0xff]
        %v310 = vld [vmem:[%s229 + $0x138] sm:$0xff]
        %v311 = vld [vmem:[%s229 + $0x140] sm:$0xff]
        %v312 = vld [vmem:[%s229 + $0x148] sm:$0xff]
        %v313 = vld [vmem:[%s229 + $0x150] sm:$0xff]
        %v314 = vld [vmem:[%s229 + $0x158] sm:$0xff]
        %v315 = vld [vmem:[%s229 + $0x160] sm:$0xff]
        %v316 = vld [vmem:[%s229 + $0x168] sm:$0xff]
        %v317 = vld [vmem:[%s229 + $0x170] sm:$0xff]
        %v318 = vld [vmem:[%s229 + $0x178] sm:$0xff]
        %v319 = vld [vmem:[%s229 + $0x180] sm:$0xff]
        %v320 = vld [vmem:[%s229 + $0x188] sm:$0xff]
        %v321 = vld [vmem:[%s229 + $0x190] sm:$0xff]
        %v322 = vld [vmem:[%s229 + $0x198] sm:$0xff]
        %v323 = vld [vmem:[%s229 + $0x1a0] sm:$0xff]
        %v324 = vld [vmem:[%s229 + $0x1a8] sm:$0xff]
        %v325 = vld [vmem:[%s229 + $0x1b0] sm:$0xff]
        %v326 = vld [vmem:[%s229 + $0x1b8] sm:$0xff]
        %v327 = vld [vmem:[%s229 + $0x1c0] sm:$0xff]
        %v328 = vld [vmem:[%s229 + $0x1c8] sm:$0xff]
        %v329 = vld [vmem:[%s229 + $0x1d0] sm:$0xff]
        %v330 = vld [vmem:[%s229 + $0x1d8] sm:$0xff]
        %v331 = vld [vmem:[%s229 + $0x1e0] sm:$0xff]
        %v332 = vld [vmem:[%s229 + $0x1e8] sm:$0xff]
        %v333 = vld [vmem:[%s229 + $0x1f0] sm:$0xff]
        %v334 = vld [vmem:[%s229 + $0x1f8] sm:$0xff]
        %v335 = vld [vmem:[#allocation2] sm:$0xff]
        %v336 = vld [vmem:[#allocation2 + $0x8] sm:$0xff]
        %v337 = vld [vmem:[#allocation2 + $0x10] sm:$0xff]
        %v338 = vld [vmem:[#allocation2 + $0x18] sm:$0xff]
        %v339 = vadd.f32 %v271, %v272
        %v340 = vadd.f32 %v339, %v273
        %v341 = vadd.f32 %v340, %v274
        %v342 = vadd.f32 %v341, %v275
        %v343 = vadd.f32 %v342, %v276
        %v344 = vadd.f32 %v343, %v277
        %v345 = vadd.f32 %v344, %v278
        %v346 = vadd.f32 %v345, %v279
        %v347 = vadd.f32 %v346, %v280
        %v348 = vadd.f32 %v347, %v281
        %v349 = vadd.f32 %v348, %v282
        %v350 = vadd.f32 %v349, %v283
        %v351 = vadd.f32 %v350, %v284
        %v352 = vadd.f32 %v351, %v285
        %v353 = vadd.f32 %v352, %v286
        %354 = vadd.xlane.f32.xlu0 %v353
        %v355 = vpop.xlane.xlu0 %354
        %v356 = vadd.f32 %v287, %v288
        %v357 = vadd.f32 %v356, %v289
        %v358 = vadd.f32 %v357, %v290
        %v359 = vadd.f32 %v358, %v291
        %v360 = vadd.f32 %v359, %v292
        %v361 = vadd.f32 %v360, %v293
        %v362 = vadd.f32 %v361, %v294
        %v363 = vadd.f32 %v362, %v295
        %v364 = vadd.f32 %v363, %v296
        %v365 = vadd.f32 %v364, %v297
        %v366 = vadd.f32 %v365, %v298
        %v367 = vadd.f32 %v366, %v299
        %v368 = vadd.f32 %v367, %v300
        %v369 = vadd.f32 %v368, %v301
        %v370 = vadd.f32 %v369, %v302
        %371 = vadd.xlane.f32.xlu0 %v370
        %v372 = vpop.xlane.xlu0 %371
        %v373 = vadd.f32 %v303, %v304
        %v374 = vadd.f32 %v373, %v305
        %v375 = vadd.f32 %v374, %v306
        %v376 = vadd.f32 %v375, %v307
        %v377 = vadd.f32 %v376, %v308
        %v378 = vadd.f32 %v377, %v309
        %v379 = vadd.f32 %v378, %v310
        %v380 = vadd.f32 %v379, %v311
        %v381 = vadd.f32 %v380, %v312
        %v382 = vadd.f32 %v381, %v313
        %v383 = vadd.f32 %v382, %v314
        %v384 = vadd.f32 %v383, %v315
        %v385 = vadd.f32 %v384, %v316
        %v386 = vadd.f32 %v385, %v317
        %v387 = vadd.f32 %v386, %v318
        %388 = vadd.xlane.f32.xlu0 %v387
        %v389 = vpop.xlane.xlu0 %388
        %v390 = vadd.f32 %v319, %v320
        %v391 = vadd.f32 %v390, %v321
        %v392 = vadd.f32 %v391, %v322
        %v393 = vadd.f32 %v392, %v323
        %v394 = vadd.f32 %v393, %v324
        %v395 = vadd.f32 %v394, %v325
        %v396 = vadd.f32 %v395, %v326
        %v397 = vadd.f32 %v396, %v327
        %v398 = vadd.f32 %v397, %v328
        %v399 = vadd.f32 %v398, %v329
        %v400 = vadd.f32 %v399, %v330
        %v401 = vadd.f32 %v400, %v331
        %v402 = vadd.f32 %v401, %v332
        %v403 = vadd.f32 %v402, %v333
        %v404 = vadd.f32 %v403, %v334
        %405 = vadd.xlane.f32.xlu0 %v404
        %v406 = vpop.xlane.xlu0 %405
        %v407 = vadd.f32 %v335, %v355
        %v408 = vadd.f32 %v336, %v372
        %v409 = vadd.f32 %v337, %v389
        %v410 = vadd.f32 %v338, %v406
        %vm411 = vcmask 7168
        %412 = vst.msk [vmem:[#allocation2] sm:$0xff] %vm411, %v407
        %413 = vst.msk [vmem:[#allocation2 + $0x8] sm:$0xff] %vm411, %v408
        %414 = vst.msk [vmem:[#allocation2 + $0x10] sm:$0xff] %vm411, %v409
        %415 = vst.msk [vmem:[#allocation2 + $0x18] sm:$0xff] %vm411, %v410
        // Predicated region
        $region49: #{tpu_custom_call.1} parent=39 // pred_check
          %p416 = pneg %p262
        $region50: #{tpu_custom_call.1} parent=39 // pred_check_branch
          %418 = sbr.rel (%p416) target = $region52
        $region51: #{tpu_custom_call.1} parent=39 // pred_region
          %v419 = vld [vmem:[#allocation2] sm:$0xff]
          %v420 = vld [vmem:[#allocation2 + $0x8] sm:$0xff]
          %v421 = vld [vmem:[#allocation2 + $0x10] sm:$0xff]
          %v422 = vld [vmem:[#allocation2 + $0x18] sm:$0xff]
          %v423 = vmul.f32 %v419, 0.00048828125
          %v424 = vmul.f32 %v420, 0.00048828125
          %v425 = vmul.f32 %v421, 0.00048828125
          %v426 = vmul.f32 %v422, 0.00048828125
          %v427 = vld [vmem:[%s1] sm:$0x3]
          %v428 = vld [vmem:[%s2] sm:$0x3]
          %vm429 = vcmask 261120
          %v431 = vsel %vm429, %v427, 0
          %433 = vmatprep.subr.mxu0 0.0
          %434 = vmatpush1.msra.mxu0 0.0
          %435 = vmatprep.subr.mxu0 0.0
          %436 = vmatpush1.msra.mxu0 0.0
          %437 = vmatprep.subr.mxu0 0.0
          %438 = vmatpush1.msra.mxu0 0.0
          %439 = vmatprep.subr.mxu0 0.0
          %440 = vmatpush1.msra.mxu0 0.0
          %441 = vmatprep.subr.mxu0 0.0
          %442 = vmatpush1.msra.mxu0 0.0
          %443 = vmatprep.subr.mxu0 0.0
          %444 = vmatpush1.msra.mxu0 0.0
          %445 = vmatprep.subr.mxu0 0.0
          %446 = vmatpush1.msra.mxu0 0.0
          %447 = vmatprep.subr.mxu0 0.0
          %448 = vmatpush1.msra.mxu0 0.0
          %449 = vmatprep.subr.mxu0 0.0
          %450 = vmatpush1.msra.mxu0 0.0
          %451 = vmatprep.subr.mxu0 0.0
          %452 = vmatpush1.msra.mxu0 0.0
          %453 = vmatprep.subr.mxu0 0.0
          %454 = vmatpush1.msra.mxu0 0.0
          %455 = vmatprep.subr.mxu0 0.0
          %456 = vmatpush1.msra.mxu0 0.0
          %457 = vmatprep.subr.mxu0 0.0
          %458 = vmatpush1.msra.mxu0 %v426
          %459 = vmatprep.subr.mxu0 0.0
          %460 = vmatpush1.msra.mxu0 %v425
          %461 = vmatprep.subr.mxu0 0.0
          %462 = vmatpush1.msra.mxu0 %v424
          %463 = vmatprep.subr.mxu0 0.0
          %464 = vmatpush1.msra.mxu0 %v423
          %465 = vmatprep.subr.mxu0 0.0
          %466 = vmatpush2.msra.mxu0 0.0
          %467 = vmatprep.subr.mxu0 0.0
          %468 = vmatpush2.msra.mxu0 0.0
          %469 = vmatprep.subr.mxu0 0.0
          %470 = vmatpush2.msra.mxu0 0.0
          %471 = vmatprep.subr.mxu0 0.0
          %472 = vmatpush2.msra.mxu0 0.0
          %473 = vmatprep.subr.mxu0 0.0
          %474 = vmatpush2.msra.mxu0 0.0
          %475 = vmatprep.subr.mxu0 0.0
          %476 = vmatpush2.msra.mxu0 0.0
          %477 = vmatprep.subr.mxu0 0.0
          %478 = vmatpush2.msra.mxu0 0.0
          %479 = vmatprep.subr.mxu0 0.0
          %480 = vmatpush2.msra.mxu0 0.0
          %481 = vmatprep.subr.mxu0 0.0
          %482 = vmatpush2.msra.mxu0 0.0
          %483 = vmatprep.subr.mxu0 0.0
          %484 = vmatpush2.msra.mxu0 0.0
          %485 = vmatprep.subr.mxu0 0.0
          %486 = vmatpush2.msra.mxu0 0.0
          %487 = vmatprep.subr.mxu0 0.0
          %488 = vmatpush2.msra.mxu0 0.0
          %489 = vmatprep.subr.mxu0 0.0
          %490 = vmatpush2.msra.mxu0 0.0
          %491 = vmatprep.subr.mxu0 0.0
          %492 = vmatpush2.msra.mxu0 0.0
          %493 = vmatprep.subr.mxu0 0.0
          %494 = vmatpush2.msra.mxu0 0.0
          %495 = vmatprep.subr.mxu0 0.0
          %496 = vmatpush2.msra.mxu0 0.0
          %497 = vmatprep.mubr.f32.mxu0 0.0
          %498 = vmatmul.mubr.f32.gmra.mxu0 %v431
          %v499 = vpop.f32.mrf.mxu0
          %v500 = vadd.f32 %v428, %v499
          %v501 = vpop.f32.mrf.mxu0
          %502 = vdwg.mxu0
          %v503 = vmax.f32 %v500, 0.0
          %v504 = vld [vmem:[%s3] sm:$0xff]
          %v505 = vld [vmem:[%s3 + $0x8] sm:$0xff]
          %v506 = vld [vmem:[%s3 + $0x10] sm:$0xff]
          %v507 = vld [vmem:[%s3 + $0x18] sm:$0xff]
          %v508 = vld [vmem:[%s4] sm:$0xff]
          %v509 = vld [vmem:[%s4 + $0x8] sm:$0xff]
          %v510 = vld [vmem:[%s4 + $0x10] sm:$0xff]
          %v511 = vld [vmem:[%s4 + $0x18] sm:$0xff]
          %vm512 = vcmask 15360
          %v514 = vsel %vm512, %v504, 0
          %v517 = vsel %vm512, %v505, 0
          %v520 = vsel %vm512, %v506, 0
          %v523 = vsel %vm512, %v507, 0
          %vm525 = vcmask 1041408
          %v527 = vsel %vm525, %v503, 0
          %529 = vmatprep.subr.mxu0 0.0
          %530 = vmatpush1.msra.mxu0 0.0
          %531 = vmatprep.subr.mxu0 0.0
          %532 = vmatpush1.msra.mxu0 0.0
          %533 = vmatprep.subr.mxu0 0.0
          %534 = vmatpush1.msra.mxu0 0.0
          %535 = vmatprep.subr.mxu0 0.0
          %536 = vmatpush1.msra.mxu0 0.0
          %537 = vmatprep.subr.mxu0 0.0
          %538 = vmatpush1.msra.mxu0 0.0
          %539 = vmatprep.subr.mxu0 0.0
          %540 = vmatpush1.msra.mxu0 0.0
          %541 = vmatprep.subr.mxu0 0.0
          %542 = vmatpush1.msra.mxu0 0.0
          %543 = vmatprep.subr.mxu0 0.0
          %544 = vmatpush1.msra.mxu0 0.0
          %545 = vmatprep.subr.mxu0 0.0
          %546 = vmatpush1.msra.mxu0 0.0
          %547 = vmatprep.subr.mxu0 0.0
          %548 = vmatpush1.msra.mxu0 0.0
          %549 = vmatprep.subr.mxu0 0.0
          %550 = vmatpush1.msra.mxu0 0.0
          %551 = vmatprep.subr.mxu0 0.0
          %552 = vmatpush1.msra.mxu0 0.0
          %553 = vmatprep.subr.mxu0 0.0
          %554 = vmatpush1.msra.mxu0 0.0
          %555 = vmatprep.subr.mxu0 0.0
          %556 = vmatpush1.msra.mxu0 0.0
          %557 = vmatprep.subr.mxu0 0.0
          %558 = vmatpush1.msra.mxu0 0.0
          %559 = vmatprep.subr.mxu0 0.0
          %560 = vmatpush1.msra.mxu0 %v527
          %561 = vmatprep.subr.mxu0 0.0
          %562 = vmatpush2.msra.mxu0 0.0
          %563 = vmatprep.subr.mxu0 0.0
          %564 = vmatpush2.msra.mxu0 0.0
          %565 = vmatprep.subr.mxu0 0.0
          %566 = vmatpush2.msra.mxu0 0.0
          %567 = vmatprep.subr.mxu0 0.0
          %568 = vmatpush2.msra.mxu0 0.0
          %569 = vmatprep.subr.mxu0 0.0
          %570 = vmatpush2.msra.mxu0 0.0
          %571 = vmatprep.subr.mxu0 0.0
          %572 = vmatpush2.msra.mxu0 0.0
          %573 = vmatprep.subr.mxu0 0.0
          %574 = vmatpush2.msra.mxu0 0.0
          %575 = vmatprep.subr.mxu0 0.0
          %576 = vmatpush2.msra.mxu0 0.0
          %577 = vmatprep.subr.mxu0 0.0
          %578 = vmatpush2.msra.mxu0 0.0
          %579 = vmatprep.subr.mxu0 0.0
          %580 = vmatpush2.msra.mxu0 0.0
          %581 = vmatprep.subr.mxu0 0.0
          %582 = vmatpush2.msra.mxu0 0.0
          %583 = vmatprep.subr.mxu0 0.0
          %584 = vmatpush2.msra.mxu0 0.0
          %585 = vmatprep.subr.mxu0 0.0
          %586 = vmatpush2.msra.mxu0 0.0
          %587 = vmatprep.subr.mxu0 0.0
          %588 = vmatpush2.msra.mxu0 0.0
          %589 = vmatprep.subr.mxu0 0.0
          %590 = vmatpush2.msra.mxu0 0.0
          %591 = vmatprep.subr.mxu0 0.0
          %592 = vmatpush2.msra.mxu0 0.0
          %593 = vmatprep.mubr.f32.mxu0 0.0
          %594 = vmatmul.mubr.f32.gmra.mxu0 %v514
          %v595 = vpop.f32.mrf.mxu0
          %v596 = vadd.f32 %v508, %v595
          %v597 = vpop.f32.mrf.mxu0
          %598 = vmatprep.mubr.f32.mxu0 0.0
          %599 = vmatmul.mubr.f32.gmra.mxu0 %v517
          %v600 = vpop.f32.mrf.mxu0
          %v601 = vadd.f32 %v509, %v600
          %v602 = vpop.f32.mrf.mxu0
          %603 = vmatprep.mubr.f32.mxu0 0.0
          %604 = vmatmul.mubr.f32.gmra.mxu0 %v520
          %v605 = vpop.f32.mrf.mxu0
          %v606 = vadd.f32 %v510, %v605
          %v607 = vpop.f32.mrf.mxu0
          %608 = vmatprep.mubr.f32.mxu0 0.0
          %609 = vmatmul.mubr.f32.gmra.mxu0 %v523
          %v610 = vpop.f32.mrf.mxu0
          %v611 = vadd.f32 %v511, %v610
          %v612 = vpop.f32.mrf.mxu0
          %613 = vdwg.mxu0
          %v614 = vxor.u32 %v596, 2147483648
          %v615 = vxor.u32 %v601, 2147483648
          %v616 = vxor.u32 %v606, 2147483648
          %v617 = vxor.u32 %v611, 2147483648
          %v618 = vmul.f32 %v614, 1.442695
          %v619 = vpow.pop %v618
          %v620 = vmul.f32 %v615, 1.442695
          %v621 = vpow.pop %v620
          %v622 = vmul.f32 %v616, 1.442695
          %v623 = vpow.pop %v622
          %v624 = vmul.f32 %v617, 1.442695
          %v625 = vpow.pop %v624
          %v626 = vadd.f32 %v619, 1.0
          %v627 = vadd.f32 %v621, 1.0
          %v628 = vadd.f32 %v623, 1.0
          %v629 = vadd.f32 %v625, 1.0
          %v630 = vrcp.pop %v626
          %v631 = vmul.f32 1.0, %v630
          %v632 = vrcp.pop %v627
          %v633 = vmul.f32 1.0, %v632
          %v634 = vrcp.pop %v628
          %v635 = vmul.f32 1.0, %v634
          %v636 = vrcp.pop %v629
          %v637 = vmul.f32 1.0, %v636
          %638 = vst.msk [vmem:[%s261] sm:$0xff] %vm411, %v631
          %639 = vst.msk [vmem:[%s261 + $0x8] sm:$0xff] %vm411, %v633
          %640 = vst.msk [vmem:[%s261 + $0x10] sm:$0xff] %vm411, %v635
          %641 = vst.msk [vmem:[%s261 + $0x18] sm:$0xff] %vm411, %v637
        $region52: #{tpu_custom_call.1} parent=39 // pred_fallthru
          _
        %p642 = scmp.lt.s32.totalorder %s23, 1
        %s643 = scalar_select %p642, %s23, 1
        %s644 = smul.addr %s643, 4
        %s645 = smul.addr %s644, 8
        %s646 = scalar_lea.vmem %s5, %s645
        // Predicated region
        $region53: #{tpu_custom_call.1} parent=39 // pred_check
          %p647 = pneg %p161
        $region54: #{tpu_custom_call.1} parent=39 // pred_check_branch
          %649 = sbr.rel (%p647) target = $region56
        $region55: #{tpu_custom_call.1} parent=39 // pred_region
          _
        $region56: #{tpu_custom_call.1} parent=39 // pred_fallthru
          _
      $region40: #{tpu_custom_call.1} parent=5 // pred_fallthru
        _
      %p650 = scmp.le.s32.totalorder 2, %s14
      // Predicated region
      $region57: #{tpu_custom_call.1} parent=5 // pred_check
        %p651 = pneg %p650
      $region58: #{tpu_custom_call.1} parent=5 // pred_check_branch
        %653 = sbr.rel (%p651) target = $region60
      $region59: #{tpu_custom_call.1} parent=5 // pred_region
        %s654 = ssub.s32 %s14, 2
        // Predicated region
        $region61: #{tpu_custom_call.1} parent=59 // pred_check
          %p655 = pneg %p167
        $region62: #{tpu_custom_call.1} parent=59 // pred_check_branch
          %657 = sbr.rel (%p655) target = $region64
        $region63: #{tpu_custom_call.1} parent=59 // pred_region
          %p658 = scmp.lt.s32.totalorder %s25, 1
          %s659 = scalar_select %p658, %s25, 1
          %s660 = smul.addr %s659, 4
          %s661 = smul.addr %s660, 8
          %s662 = scalar_lea.vmem %s5, %s661
        $region64: #{tpu_custom_call.1} parent=59 // pred_fallthru
          _
      $region60: #{tpu_custom_call.1} parent=5 // pred_fallthru
        _
    $region6: #{tpu_custom_call.1} parent=1 // loop_footer
      %s18 = sadd.s32 1, %s14
    $region7: #{tpu_custom_call.1} parent=1 // loop_footer_branch
      %13 = sbr.rel target = $region3
    $region8: #{tpu_custom_call.1} parent=1 // loop_exit
      _
    %663 = vsyncpa [#allocation4], 1
    %s664 = scalar_lea.sflag [#allocation4], 1
    %665 = vsyncpa %s664, 1

</llo_original>
